<compile_context>
chip_gen: v6e
topology: v6e:2x2x1
jax: 0.10.0
libtpu: 0.0.40
codegen_flags: <defaults>
</compile_context>

<pallas_src>
import functools

import jax
import jax.numpy as jnp
from jax.experimental import pallas as pl
from jax.experimental.pallas import tpu as pltpu


def _round_up(x, m):
    return ((x + m - 1) // m) * m


def _choose_tile(dim, tmax):
    """Largest multiple of 128 that divides `dim` (a multiple of 128) and is <= tmax."""
    t = max(128, min(tmax, dim))
    t -= t % 128
    while dim % t:
        t -= 128
    return t


# ----------------------------------------------------------------------------
# Pallas kernels: matmul (bf16 in, f32 acc on MXU) + bias + optional ReLU
# ----------------------------------------------------------------------------
def _mm_bias_kernel(x_ref, w_ref, b_ref, o_ref, *, apply_relu):
    # Single full-K block: no accumulator scratch, no K grid axis.
    y = jnp.dot(x_ref[...], w_ref[...], preferred_element_type=jnp.float32)
    y = y + b_ref[...]
    if apply_relu:
        y = jnp.maximum(y, 0.0)
    o_ref[...] = y.astype(o_ref.dtype)


def _mm_bias_acc_kernel(x_ref, w_ref, b_ref, o_ref, acc_ref, *, apply_relu):
    # K-tiled reduction: k==0 writes dot+bias (no zero-fill pass), later steps
    # accumulate, last step applies ReLU and casts to the output dtype.
    k = pl.program_id(2)
    d = jnp.dot(x_ref[...], w_ref[...], preferred_element_type=jnp.float32)

    @pl.when(k == 0)
    def _():
        acc_ref[...] = d + b_ref[...]

    @pl.when(k > 0)
    def _():
        acc_ref[...] += d

    @pl.when(k == pl.num_programs(2) - 1)
    def _():
        y = acc_ref[...]
        if apply_relu:
            y = jnp.maximum(y, 0.0)
        o_ref[...] = y.astype(o_ref.dtype)


# ----------------------------------------------------------------------------
# Weight pre-layout (done ONCE, outside the per-forward trace)
# ----------------------------------------------------------------------------
def prep_linear(w, bias, *, tn_max=512, tk_max=512):
    """Pre-lay-out a (K, N) weight + (N,) bias for the fused matmul kernel.

    Weight is padded/cast to bf16 (K padded only to the bf16 sublane multiple
    when a single full-K block is used; to a tk multiple otherwise), N is padded
    to a multiple of the N tile (lane-dense stores)."""
    K, N = w.shape
    Np = _round_up(N, 128)
    tn = _choose_tile(Np, tn_max)
    if K <= tk_max:
        Kp = _round_up(K, 16)          # full-K block; block dim == array dim
        tk = Kp
    else:
        Kp = _round_up(K, 128)
        tk = _choose_tile(Kp, tk_max)
    wp = jnp.zeros((Kp, Np), jnp.bfloat16).at[:K, :N].set(w.astype(jnp.bfloat16))
    bp = jnp.zeros((1, Np), jnp.float32).at[0, :N].set(bias.astype(jnp.float32))
    return {"wp": wp, "bp": bp, "K": K, "N": N, "Kp": Kp, "Np": Np, "tk": tk, "tn": tn}


# ----------------------------------------------------------------------------
# Fused matmul wrapper
# ----------------------------------------------------------------------------
def fused_matmul_bias(x, lin, *, apply_relu, out_dtype, tm_max=512):
    """relu?(x @ w + bias) with pre-laid-out bf16 weight. x: (M, K) -> (M, N) out_dtype."""
    M, K = x.shape
    assert K == lin["K"]
    Kp, Np, tk, tn = lin["Kp"], lin["Np"], lin["tk"], lin["tn"]

    Mp = _round_up(M, 128)
    tm = _choose_tile(Mp, tm_max)

    xp = jnp.zeros((Mp, Kp), jnp.bfloat16).at[:M, :K].set(x.astype(jnp.bfloat16))

    gm, gn, gk = Mp // tm, Np // tn, Kp // tk
    cparams = pltpu.CompilerParams(
        dimension_semantics=(("parallel", "parallel") if gk == 1
                             else ("parallel", "parallel", "arbitrary")),
        vmem_limit_bytes=32 * 1024 * 1024,
    )

    if gk == 1:
        out = pl.pallas_call(
            functools.partial(_mm_bias_kernel, apply_relu=apply_relu),
            out_shape=jax.ShapeDtypeStruct((Mp, Np), out_dtype),
            grid_spec=pltpu.PrefetchScalarGridSpec(
                num_scalar_prefetch=0,
                grid=(gm, gn),
                in_specs=[
                    pl.BlockSpec((tm, Kp), lambda i, j: (i, 0)),
                    pl.BlockSpec((Kp, tn), lambda i, j: (0, j)),
                    pl.BlockSpec((1, tn), lambda i, j: (0, j)),   # bias follows N tile
                ],
                out_specs=pl.BlockSpec((tm, tn), lambda i, j: (i, j)),
            ),
            compiler_params=cparams,
        )(xp, lin["wp"], lin["bp"])
    else:
        out = pl.pallas_call(
            functools.partial(_mm_bias_acc_kernel, apply_relu=apply_relu),
            out_shape=jax.ShapeDtypeStruct((Mp, Np), out_dtype),
            grid_spec=pltpu.PrefetchScalarGridSpec(
                num_scalar_prefetch=0,
                grid=(gm, gn, gk),
                in_specs=[
                    pl.BlockSpec((tm, tk), lambda i, j, k: (i, k)),
                    pl.BlockSpec((tk, tn), lambda i, j, k: (k, j)),
                    pl.BlockSpec((1, tn), lambda i, j, k: (0, j)),
                ],
                out_specs=pl.BlockSpec((tm, tn), lambda i, j, k: (i, j)),
                scratch_shapes=[pltpu.VMEM((tm, tn), jnp.float32)],
            ),
            compiler_params=cparams,
        )(xp, lin["wp"], lin["bp"])
    return out[:M, :lin["N"]]


# ----------------------------------------------------------------------------
# Glue: im2col (NHWC, bf16) so conv becomes a matmul
# ----------------------------------------------------------------------------
def im2col_nhwc(x_nhwc, k, stride, pad):
    """x_nhwc: (N, H, W, C) -> patches (N, Ho, Wo, k*k*C), flattened as (kh, kw, C)."""
    sh, sw = stride
    x = jnp.pad(x_nhwc, ((0, 0), (pad, pad), (pad, pad), (0, 0)))
    _, Hp, Wp, _ = x.shape
    Ho = (Hp - k) // sh + 1
    Wo = (Wp - k) // sw + 1
    cols = []
    for di in range(k):
        for dj in range(k):
            cols.append(x[:, di:di + Ho * sh:sh, dj:dj + Wo * sw:sw, :])
    patches = jnp.concatenate(cols, axis=-1)
    return patches, Ho, Wo


def conv_bn_relu(x_nhwc, conv_prep, *, stride, pad, out_dtype=jnp.bfloat16):
    """Conv2d(no bias) + folded BatchNorm + ReLU via im2col + fused Pallas matmul."""
    k = conv_prep["ksize"]
    lin = conv_prep["lin"]
    # TODO(synk): for production backbone sizes, fuse the k*k taps into the
    # matmul kernel (shifted NHWC windows read via manual DMA) instead of
    # materializing the k^2-inflated im2col tensor in HBM.
    patches, Ho, Wo = im2col_nhwc(x_nhwc.astype(jnp.bfloat16), k, stride, pad)
    Nb, Cin = patches.shape[0], x_nhwc.shape[-1]
    pm = patches.reshape(Nb * Ho * Wo, k * k * Cin)
    y = fused_matmul_bias(pm, lin, apply_relu=True, out_dtype=out_dtype)
    return y.reshape(Nb, Ho, Wo, lin["N"])


# ----------------------------------------------------------------------------
# Parameter preparation: BN fold + weight re-layout, done once per model
# ----------------------------------------------------------------------------
def prep_conv(w_oihw, gamma, beta, mean, var, eps=1e-5):
    Cout, Cin, kh, kw = w_oihw.shape
    assert kh == kw
    scale = gamma / jnp.sqrt(var + eps)
    bias = beta - mean * scale
    # flatten to (kh*kw*Cin, Cout) matching the patch ordering; fold BN scale in
    wm = jnp.transpose(w_oihw, (2, 3, 1, 0)).reshape(kh * kw * Cin, Cout)
    wm = wm.astype(jnp.float32) * scale.astype(jnp.float32)[None, :]
    return {"ksize": kh, "lin": prep_linear(wm, bias)}


def prepare_params(params):
    return {
        "conv1": prep_conv(params["conv1_w"], params["bn1_gamma"], params["bn1_beta"],
                           params["bn1_mean"], params["bn1_var"]),
        "conv2": prep_conv(params["conv2_w"], params["bn2_gamma"], params["bn2_beta"],
                           params["bn2_mean"], params["bn2_var"]),
        "head": {"lin": prep_linear(jnp.transpose(params["fc_w"], (1, 0)), params["fc_b"])},
    }


# ----------------------------------------------------------------------------
# RecModel forward: backbone -> neck (Im2Seq) -> head (CTC linear)
# ----------------------------------------------------------------------------
def rec_model_forward(x_nchw, prep):
    # ---- backbone (simplified conv stem; see TODO(synk) at top) ----
    x = jnp.transpose(x_nchw, (0, 2, 3, 1))          # NCHW -> NHWC for im2col
    x = conv_bn_relu(x, prep["conv1"], stride=(2, 2), pad=1)      # bf16 activations
    x = conv_bn_relu(x, prep["conv2"], stride=(2, 1), pad=1)      # bf16 activations

    # collapse H to 1 (rec backbones guarantee H==1 before the neck)
    x = jnp.mean(x.astype(jnp.float32), axis=1, keepdims=True).astype(jnp.bfloat16)

    # ---- neck: Im2Seq ----
    # PyTorch: (N, C, 1, W) -> squeeze(2) -> (N, C, W) -> permute -> (N, W, C)
    assert x.shape[1] == 1
    seq = x[:, 0, :, :]                               # (N, W, C)

    # ---- head: CTC = nn.Linear(C, n_class); logits stay f32 ----
    N, W, C = seq.shape
    n_class = prep["head"]["lin"]["N"]
    logits = fused_matmul_bias(seq.reshape(N * W, C), prep["head"]["lin"],
                               apply_relu=False, out_dtype=jnp.float32)
    return logits.reshape(N, W, n_class)


# ----------------------------------------------------------------------------
# Deterministic parameter init
# ----------------------------------------------------------------------------
def init_params(key, in_channels, c1, c2, n_class):
    ks = jax.random.split(key, 10)
    return {
        "conv1_w": 0.1 * jax.random.normal(ks[0], (c1, in_channels, 3, 3), jnp.float32),
        "bn1_gamma": 1.0 + 0.05 * jax.random.normal(ks[1], (c1,), jnp.float32),
        "bn1_beta": 0.05 * jax.random.normal(ks[2], (c1,), jnp.float32),
        "bn1_mean": 0.05 * jax.random.normal(ks[3], (c1,), jnp.float32),
        "bn1_var": 1.0 + jnp.abs(0.05 * jax.random.normal(ks[4], (c1,), jnp.float32)),
        "conv2_w": 0.1 * jax.random.normal(ks[5], (c2, c1, 3, 3), jnp.float32),
        "bn2_gamma": 1.0 + 0.05 * jax.random.normal(ks[6], (c2,), jnp.float32),
        "bn2_beta": 0.05 * jax.random.normal(ks[7], (c2,), jnp.float32),
        "bn2_mean": jnp.zeros((c2,), jnp.float32),
        "bn2_var": jnp.ones((c2,), jnp.float32),
        "fc_w": 0.1 * jax.random.normal(ks[8], (n_class, c2), jnp.float32),
        "fc_b": 0.05 * jax.random.normal(ks[9], (n_class,), jnp.float32),
    }


if __name__ == "__main__":
    key = jax.random.PRNGKey(0)
    k_x, k_p = jax.random.split(key)

    N, Cin, H, W = 2, 4, 16, 16
    C1, C2, N_CLASS = 8, 16, 12

    x = jax.random.normal(k_x, (N, Cin, H, W), jnp.float32)
    params = init_params(k_p, Cin, C1, C2, N_CLASS)

    # Weight re-layout / BN fold happens exactly once, outside the forward trace.
    prep = prepare_params(params)

    fwd = jax.jit(lambda xin: rec_model_forward(xin, prep))
    out = jax.block_until_ready(fwd(x))

    # sanity: (N, seq_len, n_class); seq_len = W after stride (2,2)+(2,1) convs = 8
    assert out.shape == (N, 8, N_CLASS), out.shape
    assert bool(jnp.all(jnp.isfinite(out)))
    print("KERNEL_OK")
</pallas_src>

<mosaic_0001>
module attributes {stable_mosaic.version = 11 : i64} {
  func.func @_mm_bias_kernel(%arg0: i32, %arg1: i32, %arg2: memref<128x48xbf16, #tpu.memory_space<vmem>>, %arg3: memref<48x128xbf16, #tpu.memory_space<vmem>>, %arg4: memref<1x128xf32, #tpu.memory_space<vmem>>, %arg5: memref<128x128xbf16, #tpu.memory_space<vmem>>) attributes {dimension_semantics = [#tpu.dimension_semantics<parallel>, #tpu.dimension_semantics<parallel>], iteration_bounds = array<i64: 1, 1>, scalar_prefetch = 0 : i64, scratch_operands = 0 : i64, tpu.core_type = #tpu.core_type<tc>, window_params = [{transform_indices = @transform_0, window_bounds = array<i64: 128, 48>}, {transform_indices = @transform_1, window_bounds = array<i64: 48, 128>}, {transform_indices = @transform_2, window_bounds = array<i64: 1, 128>}, {transform_indices = @transform_3, window_bounds = array<i64: 128, 128>}]} {
    %c0 = arith.constant 0 : index
    %c0_0 = arith.constant 0 : index
    %0 = vector.load %arg2[%c0, %c0_0] : memref<128x48xbf16, #tpu.memory_space<vmem>>, vector<128x48xbf16>
    %c0_1 = arith.constant 0 : index
    %c0_2 = arith.constant 0 : index
    %1 = vector.load %arg3[%c0_1, %c0_2] : memref<48x128xbf16, #tpu.memory_space<vmem>>, vector<48x128xbf16>
    %cst = arith.constant dense<0.000000e+00> : vector<128x128xf32>
    %2 = tpu.matmul %0, %1, %cst {dimension_numbers = #tpu.dot_dimension_numbers<[1], [0], [0], [1], [0, 0, 1, 1], [], []>} : vector<128x48xbf16>, vector<48x128xbf16>, vector<128x128xf32> -> vector<128x128xf32>
    %c0_3 = arith.constant 0 : index
    %c0_4 = arith.constant 0 : index
    %3 = vector.load %arg4[%c0_3, %c0_4] : memref<1x128xf32, #tpu.memory_space<vmem>>, vector<1x128xf32>
    %4 = vector.broadcast %3 : vector<1x128xf32> to vector<128x128xf32>
    %5 = arith.addf %2, %4 : vector<128x128xf32>
    %cst_5 = arith.constant 0.000000e+00 : f32
    %6 = vector.broadcast %cst_5 : f32 to vector<128x128xf32>
    %7 = arith.maximumf %5, %6 : vector<128x128xf32>
    %8 = arith.truncf %7 : vector<128x128xf32> to vector<128x128xbf16>
    %c0_6 = arith.constant 0 : index
    %c0_7 = arith.constant 0 : index
    %9 = vector.load %arg5[%c0_6, %c0_7] : memref<128x128xbf16, #tpu.memory_space<vmem>>, vector<128x128xbf16>
    tpu.vector_store %arg5[%c0_6, %c0_7], %8 {strides = array<i32>} : memref<128x128xbf16, #tpu.memory_space<vmem>>, vector<128x128xbf16>,
    return
  }
  func.func @transform_0(%arg0: i32, %arg1: i32) -> (i32, i32) {
    %c0_i32 = arith.constant 0 : i32
    %c0_i32_0 = arith.constant 0 : i32
    return %arg0, %c0_i32 : i32, i32
  }
  func.func @transform_1(%arg0: i32, %arg1: i32) -> (i32, i32) {
    %c0_i32 = arith.constant 0 : i32
    %c0_i32_0 = arith.constant 0 : i32
    return %c0_i32, %arg1 : i32, i32
  }
  func.func @transform_2(%arg0: i32, %arg1: i32) -> (i32, i32) {
    %c0_i32 = arith.constant 0 : i32
    %c0_i32_0 = arith.constant 0 : i32
    return %c0_i32, %arg1 : i32, i32
  }
  func.func @transform_3(%arg0: i32, %arg1: i32) -> (i32, i32) {
    %c0_i32 = arith.constant 0 : i32
    return %arg0, %arg1 : i32, i32
  }
}

module attributes {stable_mosaic.version = 11 : i64} {
  func.func @_mm_bias_kernel(%arg0: i32, %arg1: i32, %arg2: memref<128x80xbf16, #tpu.memory_space<vmem>>, %arg3: memref<80x128xbf16, #tpu.memory_space<vmem>>, %arg4: memref<1x128xf32, #tpu.memory_space<vmem>>, %arg5: memref<128x128xbf16, #tpu.memory_space<vmem>>) attributes {dimension_semantics = [#tpu.dimension_semantics<parallel>, #tpu.dimension_semantics<parallel>], iteration_bounds = array<i64: 1, 1>, scalar_prefetch = 0 : i64, scratch_operands = 0 : i64, tpu.core_type = #tpu.core_type<tc>, window_params = [{transform_indices = @transform_0, window_bounds = array<i64: 128, 80>}, {transform_indices = @transform_1, window_bounds = array<i64: 80, 128>}, {transform_indices = @transform_2, window_bounds = array<i64: 1, 128>}, {transform_indices = @transform_3, window_bounds = array<i64: 128, 128>}]} {
    %c0 = arith.constant 0 : index
    %c0_0 = arith.constant 0 : index
    %0 = vector.load %arg2[%c0, %c0_0] : memref<128x80xbf16, #tpu.memory_space<vmem>>, vector<128x80xbf16>
    %c0_1 = arith.constant 0 : index
    %c0_2 = arith.constant 0 : index
    %1 = vector.load %arg3[%c0_1, %c0_2] : memref<80x128xbf16, #tpu.memory_space<vmem>>, vector<80x128xbf16>
    %cst = arith.constant dense<0.000000e+00> : vector<128x128xf32>
    %2 = tpu.matmul %0, %1, %cst {dimension_numbers = #tpu.dot_dimension_numbers<[1], [0], [0], [1], [0, 0, 1, 1], [], []>} : vector<128x80xbf16>, vector<80x128xbf16>, vector<128x128xf32> -> vector<128x128xf32>
    %c0_3 = arith.constant 0 : index
    %c0_4 = arith.constant 0 : index
    %3 = vector.load %arg4[%c0_3, %c0_4] : memref<1x128xf32, #tpu.memory_space<vmem>>, vector<1x128xf32>
    %4 = vector.broadcast %3 : vector<1x128xf32> to vector<128x128xf32>
    %5 = arith.addf %2, %4 : vector<128x128xf32>
    %cst_5 = arith.constant 0.000000e+00 : f32
    %6 = vector.broadcast %cst_5 : f32 to vector<128x128xf32>
    %7 = arith.maximumf %5, %6 : vector<128x128xf32>
    %8 = arith.truncf %7 : vector<128x128xf32> to vector<128x128xbf16>
    %c0_6 = arith.constant 0 : index
    %c0_7 = arith.constant 0 : index
    %9 = vector.load %arg5[%c0_6, %c0_7] : memref<128x128xbf16, #tpu.memory_space<vmem>>, vector<128x128xbf16>
    tpu.vector_store %arg5[%c0_6, %c0_7], %8 {strides = array<i32>} : memref<128x128xbf16, #tpu.memory_space<vmem>>, vector<128x128xbf16>,
    return
  }
  func.func @transform_0(%arg0: i32, %arg1: i32) -> (i32, i32) {
    %c0_i32 = arith.constant 0 : i32
    %c0_i32_0 = arith.constant 0 : i32
    return %arg0, %c0_i32 : i32, i32
  }
  func.func @transform_1(%arg0: i32, %arg1: i32) -> (i32, i32) {
    %c0_i32 = arith.constant 0 : i32
    %c0_i32_0 = arith.constant 0 : i32
    return %c0_i32, %arg1 : i32, i32
  }
  func.func @transform_2(%arg0: i32, %arg1: i32) -> (i32, i32) {
    %c0_i32 = arith.constant 0 : i32
    %c0_i32_0 = arith.constant 0 : i32
    return %c0_i32, %arg1 : i32, i32
  }
  func.func @transform_3(%arg0: i32, %arg1: i32) -> (i32, i32) {
    %c0_i32 = arith.constant 0 : i32
    return %arg0, %arg1 : i32, i32
  }
}

module attributes {stable_mosaic.version = 11 : i64} {
  func.func @_mm_bias_kernel(%arg0: i32, %arg1: i32, %arg2: memref<128x16xbf16, #tpu.memory_space<vmem>>, %arg3: memref<16x128xbf16, #tpu.memory_space<vmem>>, %arg4: memref<1x128xf32, #tpu.memory_space<vmem>>, %arg5: memref<128x128xf32, #tpu.memory_space<vmem>>) attributes {dimension_semantics = [#tpu.dimension_semantics<parallel>, #tpu.dimension_semantics<parallel>], iteration_bounds = array<i64: 1, 1>, scalar_prefetch = 0 : i64, scratch_operands = 0 : i64, tpu.core_type = #tpu.core_type<tc>, window_params = [{transform_indices = @transform_0, window_bounds = array<i64: 128, 16>}, {transform_indices = @transform_1, window_bounds = array<i64: 16, 128>}, {transform_indices = @transform_2, window_bounds = array<i64: 1, 128>}, {transform_indices = @transform_3, window_bounds = array<i64: 128, 128>}]} {
    %c0 = arith.constant 0 : index
    %c0_0 = arith.constant 0 : index
    %0 = vector.load %arg2[%c0, %c0_0] : memref<128x16xbf16, #tpu.memory_space<vmem>>, vector<128x16xbf16>
    %c0_1 = arith.constant 0 : index
    %c0_2 = arith.constant 0 : index
    %1 = vector.load %arg3[%c0_1, %c0_2] : memref<16x128xbf16, #tpu.memory_space<vmem>>, vector<16x128xbf16>
    %cst = arith.constant dense<0.000000e+00> : vector<128x128xf32>
    %2 = tpu.matmul %0, %1, %cst {dimension_numbers = #tpu.dot_dimension_numbers<[1], [0], [0], [1], [0, 0, 1, 1], [], []>} : vector<128x16xbf16>, vector<16x128xbf16>, vector<128x128xf32> -> vector<128x128xf32>
    %c0_3 = arith.constant 0 : index
    %c0_4 = arith.constant 0 : index
    %3 = vector.load %arg4[%c0_3, %c0_4] : memref<1x128xf32, #tpu.memory_space<vmem>>, vector<1x128xf32>
    %4 = vector.broadcast %3 : vector<1x128xf32> to vector<128x128xf32>
    %5 = arith.addf %2, %4 : vector<128x128xf32>
    %c0_5 = arith.constant 0 : index
    %c0_6 = arith.constant 0 : index
    %6 = vector.load %arg5[%c0_5, %c0_6] : memref<128x128xf32, #tpu.memory_space<vmem>>, vector<128x128xf32>
    tpu.vector_store %arg5[%c0_5, %c0_6], %5 {strides = array<i32>} : memref<128x128xf32, #tpu.memory_space<vmem>>, vector<128x128xf32>,
    return
  }
  func.func @transform_0(%arg0: i32, %arg1: i32) -> (i32, i32) {
    %c0_i32 = arith.constant 0 : i32
    %c0_i32_0 = arith.constant 0 : i32
    return %arg0, %c0_i32 : i32, i32
  }
  func.func @transform_1(%arg0: i32, %arg1: i32) -> (i32, i32) {
    %c0_i32 = arith.constant 0 : i32
    %c0_i32_0 = arith.constant 0 : i32
    return %c0_i32, %arg1 : i32, i32
  }
  func.func @transform_2(%arg0: i32, %arg1: i32) -> (i32, i32) {
    %c0_i32 = arith.constant 0 : i32
    %c0_i32_0 = arith.constant 0 : i32
    return %c0_i32, %arg1 : i32, i32
  }
  func.func @transform_3(%arg0: i32, %arg1: i32) -> (i32, i32) {
    %c0_i32 = arith.constant 0 : i32
    return %arg0, %arg1 : i32, i32
  }
}

</mosaic_0001>

<llo_original>
// kernel: _lambda_.3
$region0: #{_lambda_.3}
  #allocation0 [shape = 'u32[]', space=smem, size = 0x4, offset = 0x4, fixed_abs, tag = 'smem constant byte address 0x4 - core index']
  #allocation1 [shape = 'u32[144,128]{1,0:T(1,128)}', space=vmem, size = 0x12000, scoped, tag = 'internal scratch']
  %s0 = inlined_call_operand.vmem [shape: bf16[128,48], index: 0, kind: input, shape index: {}]
  %s1 = inlined_call_operand.vmem [shape: bf16[48,128], index: 1, kind: input, shape index: {}]
  %s2 = inlined_call_operand.vmem [shape: f32[1,128], index: 2, kind: input, shape index: {}]
  %s3 = inlined_call_operand.vmem [shape: bf16[128,128], index: 3, kind: output, shape index: {}]
  %s4 = sld [smem:[#allocation0]]
  $region22: #{_lambda_.3} parent=0
    _
  %s6 = ssub.s32 1, %s4
  %s7 = scalar_select 0, %s6, %s4
  // Predicated region
  $region2: #{_lambda_.3} parent=0 // pred_check
    _
  $region3: #{_lambda_.3} parent=0 // pred_check_branch
    %9 = sbr.rel (0) target = $region5
  $region4: #{_lambda_.3} parent=0 // pred_region
    _
  $region5: #{_lambda_.3} parent=0 // pred_fallthru
    _
  // Predicated region
  $region6: #{_lambda_.3} parent=0 // pred_check
    _
  $region7: #{_lambda_.3} parent=0 // pred_check_branch
    %11 = sbr.rel (0) target = $region9
  $region8: #{_lambda_.3} parent=0 // pred_region
    _
  $region9: #{_lambda_.3} parent=0 // pred_fallthru
    _
  // Predicated region
  $region10: #{_lambda_.3} parent=0 // pred_check
    _
  $region11: #{_lambda_.3} parent=0 // pred_check_branch
    %13 = sbr.rel (0) target = $region13
  $region12: #{_lambda_.3} parent=0 // pred_region
    _
  $region13: #{_lambda_.3} parent=0 // pred_fallthru
    _
  %v15 = vld [vmem:[%s0] sm:$0xf]
  %v16 = vld [vmem:[%s0 + $0x4] sm:$0xf]
  %v17 = vld [vmem:[%s0 + $0x8] sm:$0xf]
  %v18 = vld [vmem:[%s0 + $0xc] sm:$0xf]
  %v19 = vld [vmem:[%s0 + $0x10] sm:$0xf]
  %v20 = vld [vmem:[%s0 + $0x14] sm:$0xf]
  %v21 = vld [vmem:[%s0 + $0x18] sm:$0xf]
  %v22 = vld [vmem:[%s0 + $0x1c] sm:$0xf]
  %v23 = vld [vmem:[%s0 + $0x20] sm:$0xf]
  %v24 = vld [vmem:[%s0 + $0x24] sm:$0xf]
  %v25 = vld [vmem:[%s0 + $0x28] sm:$0xf]
  %v26 = vld [vmem:[%s0 + $0x2c] sm:$0xf]
  %v27 = vld [vmem:[%s0 + $0x30] sm:$0xf]
  %v28 = vld [vmem:[%s0 + $0x34] sm:$0xf]
  %v29 = vld [vmem:[%s0 + $0x38] sm:$0xf]
  %v30 = vld [vmem:[%s0 + $0x3c] sm:$0xf]
  %v31 = vld [vmem:[%s1] sm:$0xf]
  %v32 = vld [vmem:[%s1 + $0x4] sm:$0xf]
  %v33 = vld [vmem:[%s1 + $0x8] sm:$0xf]
  %v34 = vld [vmem:[%s1 + $0xc] sm:$0xf]
  %v35 = vld [vmem:[%s1 + $0x10] sm:$0xf]
  %v36 = vld [vmem:[%s1 + $0x14] sm:$0xf]
  %v37 = vld [vmem:[%s2] sm:$0x1]
  %v39 = vlaneseq
  %v40 = vshrl.u32 %v39, 7
  %v41 = vsub.s32 0, %v40
  %v42 = vrot.slane %v37, %v41
  %v60 = vunpack.c.l.b16 %v15
  %v61 = vunpack.c.l.b16 %v16
  %v62 = vunpack.c.l.b16 %v17
  %v63 = vunpack.c.l.b16 %v18
  %v64 = vunpack.c.l.b16 %v19
  %v65 = vunpack.c.l.b16 %v20
  %v66 = vunpack.c.l.b16 %v21
  %v67 = vunpack.c.l.b16 %v22
  %v68 = vunpack.c.l.b16 %v23
  %v69 = vunpack.c.l.b16 %v24
  %v70 = vunpack.c.l.b16 %v25
  %v71 = vunpack.c.l.b16 %v26
  %v72 = vunpack.c.l.b16 %v27
  %v73 = vunpack.c.l.b16 %v28
  %v74 = vunpack.c.l.b16 %v29
  %v75 = vunpack.c.l.b16 %v30
  %v76 = vpack.c.b16 %v61, %v60
  %v77 = vpack.c.b16 %v63, %v62
  %v78 = vpack.c.b16 %v65, %v64
  %v79 = vpack.c.b16 %v67, %v66
  %v80 = vpack.c.b16 %v69, %v68
  %v81 = vpack.c.b16 %v71, %v70
  %v82 = vpack.c.b16 %v73, %v72
  %v83 = vpack.c.b16 %v75, %v74
  %v90 = vunpack.c.l.b16 %v31
  %v91 = vunpack.c.l.b16 %v32
  %v92 = vunpack.c.l.b16 %v33
  %v93 = vunpack.c.l.b16 %v34
  %v94 = vunpack.c.l.b16 %v35
  %v95 = vunpack.c.l.b16 %v36
  %v96 = vpack.c.b16 %v91, %v90
  %v97 = vpack.c.b16 %v93, %v92
  %v98 = vpack.c.b16 %v95, %v94
  %vm102 = vcmask 392192
  %v104 = vsel %vm102, %v76, 0
  %v107 = vsel %vm102, %v77, 0
  %v110 = vsel %vm102, %v78, 0
  %v113 = vsel %vm102, %v79, 0
  %v116 = vsel %vm102, %v80, 0
  %v119 = vsel %vm102, %v81, 0
  %v122 = vsel %vm102, %v82, 0
  %v125 = vsel %vm102, %v83, 0
  %127 = vmatprep.subr.bf16.mxu0 0
  %128 = vmatpush1.bf16.msra.mxu0 0
  %129 = vmatprep.subr.bf16.mxu0 0
  %130 = vmatpush1.bf16.msra.mxu0 0
  %131 = vmatprep.subr.bf16.mxu0 0
  %132 = vmatpush1.bf16.msra.mxu0 0
  %133 = vmatprep.subr.bf16.mxu0 0
  %134 = vmatpush1.bf16.msra.mxu0 0
  %135 = vmatprep.subr.bf16.mxu0 0
  %136 = vmatpush1.bf16.msra.mxu0 0
  %137 = vmatprep.subr.bf16.mxu0 0
  %138 = vmatpush1.bf16.msra.mxu0 %v98
  %139 = vmatprep.subr.bf16.mxu0 0
  %140 = vmatpush1.bf16.msra.mxu0 %v97
  %141 = vmatprep.subr.bf16.mxu0 0
  %142 = vmatpush1.bf16.msra.mxu0 %v96
  %143 = vmatprep.subr.bf16.mxu0 0
  %144 = vmatpush2.bf16.msra.mxu0 0
  %145 = vmatprep.subr.bf16.mxu0 0
  %146 = vmatpush2.bf16.msra.mxu0 0
  %147 = vmatprep.subr.bf16.mxu0 0
  %148 = vmatpush2.bf16.msra.mxu0 0
  %149 = vmatprep.subr.bf16.mxu0 0
  %150 = vmatpush2.bf16.msra.mxu0 0
  %151 = vmatprep.subr.bf16.mxu0 0
  %152 = vmatpush2.bf16.msra.mxu0 0
  %153 = vmatprep.subr.bf16.mxu0 0
  %154 = vmatpush2.bf16.msra.mxu0 0
  %155 = vmatprep.subr.bf16.mxu0 0
  %156 = vmatpush2.bf16.msra.mxu0 0
  %157 = vmatprep.subr.bf16.mxu0 0
  %158 = vmatpush2.bf16.msra.mxu0 0
  %159 = vmatprep.mubr.bf16.mxu0 0
  %160 = vmatmul.mubr.bf16.gmra.mxu0 %v104
  %v161 = vpop.f32.mrf.mxu0
  %v162 = vadd.f32 %v42, %v161
  %v163 = vpop.f32.mrf.mxu0
  %v164 = vpop.f32.mrf.mxu0
  %v165 = vadd.f32 %v42, %v164
  %v166 = vpop.f32.mrf.mxu0
  %167 = vmatprep.mubr.bf16.mxu0 0
  %168 = vmatmul.mubr.bf16.gmra.mxu0 %v107
  %v169 = vpop.f32.mrf.mxu0
  %v170 = vadd.f32 %v42, %v169
  %v171 = vpop.f32.mrf.mxu0
  %v172 = vpop.f32.mrf.mxu0
  %v173 = vadd.f32 %v42, %v172
  %v174 = vpop.f32.mrf.mxu0
  %175 = vmatprep.mubr.bf16.mxu0 0
  %176 = vmatmul.mubr.bf16.gmra.mxu0 %v110
  %v177 = vpop.f32.mrf.mxu0
  %v178 = vadd.f32 %v42, %v177
  %v179 = vpop.f32.mrf.mxu0
  %v180 = vpop.f32.mrf.mxu0
  %v181 = vadd.f32 %v42, %v180
  %v182 = vpop.f32.mrf.mxu0
  %183 = vmatprep.mubr.bf16.mxu0 0
  %184 = vmatmul.mubr.bf16.gmra.mxu0 %v113
  %v185 = vpop.f32.mrf.mxu0
  %v186 = vadd.f32 %v42, %v185
  %v187 = vpop.f32.mrf.mxu0
  %v188 = vpop.f32.mrf.mxu0
  %v189 = vadd.f32 %v42, %v188
  %v190 = vpop.f32.mrf.mxu0
  %191 = vmatprep.mubr.bf16.mxu0 0
  %192 = vmatmul.mubr.bf16.gmra.mxu0 %v116
  %v193 = vpop.f32.mrf.mxu0
  %v194 = vadd.f32 %v42, %v193
  %v195 = vpop.f32.mrf.mxu0
  %v196 = vpop.f32.mrf.mxu0
  %v197 = vadd.f32 %v42, %v196
  %v198 = vpop.f32.mrf.mxu0
  %199 = vmatprep.mubr.bf16.mxu0 0
  %200 = vmatmul.mubr.bf16.gmra.mxu0 %v119
  %v201 = vpop.f32.mrf.mxu0
  %v202 = vadd.f32 %v42, %v201
  %v203 = vpop.f32.mrf.mxu0
  %v204 = vpop.f32.mrf.mxu0
  %v205 = vadd.f32 %v42, %v204
  %v206 = vpop.f32.mrf.mxu0
  %207 = vmatprep.mubr.bf16.mxu0 0
  %208 = vmatmul.mubr.bf16.gmra.mxu0 %v122
  %v209 = vpop.f32.mrf.mxu0
  %v210 = vadd.f32 %v42, %v209
  %v211 = vpop.f32.mrf.mxu0
  %v212 = vpop.f32.mrf.mxu0
  %v213 = vadd.f32 %v42, %v212
  %v214 = vpop.f32.mrf.mxu0
  %215 = vmatprep.mubr.bf16.mxu0 0
  %216 = vmatmul.mubr.bf16.gmra.mxu0 %v125
  %v217 = vpop.f32.mrf.mxu0
  %v218 = vadd.f32 %v42, %v217
  %v219 = vpop.f32.mrf.mxu0
  %v220 = vpop.f32.mrf.mxu0
  %v221 = vadd.f32 %v42, %v220
  %v222 = vpop.f32.mrf.mxu0
  %223 = vdwg.mxu0
  %v224 = vmax.f32 %v162, 0.0
  %v225 = vmax.f32 %v165, 0.0
  %v226 = vmax.f32 %v170, 0.0
  %v227 = vmax.f32 %v173, 0.0
  %v228 = vmax.f32 %v178, 0.0
  %v229 = vmax.f32 %v181, 0.0
  %v230 = vmax.f32 %v186, 0.0
  %v231 = vmax.f32 %v189, 0.0
  %v232 = vmax.f32 %v194, 0.0
  %v233 = vmax.f32 %v197, 0.0
  %v234 = vmax.f32 %v202, 0.0
  %v235 = vmax.f32 %v205, 0.0
  %v236 = vmax.f32 %v210, 0.0
  %v237 = vmax.f32 %v213, 0.0
  %v238 = vmax.f32 %v218, 0.0
  %v239 = vmax.f32 %v221, 0.0
  %v240 = vpack.c.bf16 %v225, %v224
  %v241 = vpack.c.bf16 %v227, %v226
  %v242 = vpack.c.bf16 %v229, %v228
  %v243 = vpack.c.bf16 %v231, %v230
  %v244 = vpack.c.bf16 %v233, %v232
  %v245 = vpack.c.bf16 %v235, %v234
  %v246 = vpack.c.bf16 %v237, %v236
  %v247 = vpack.c.bf16 %v239, %v238
  %v256 = vunpack.c.l.b16 %v240
  %v257 = vunpack.c.h.b16 %v240
  %v258 = vunpack.c.l.b16 %v241
  %v259 = vunpack.c.h.b16 %v241
  %v260 = vunpack.c.l.b16 %v242
  %v261 = vunpack.c.h.b16 %v242
  %v262 = vunpack.c.l.b16 %v243
  %v263 = vunpack.c.h.b16 %v243
  %v264 = vunpack.c.l.b16 %v244
  %v265 = vunpack.c.h.b16 %v244
  %v266 = vunpack.c.l.b16 %v245
  %v267 = vunpack.c.h.b16 %v245
  %v268 = vunpack.c.l.b16 %v246
  %v269 = vunpack.c.h.b16 %v246
  %v270 = vunpack.c.l.b16 %v247
  %v271 = vunpack.c.h.b16 %v247
  %v272 = vpack.c.b16 %v256, %v256
  %v273 = vpack.c.b16 %v257, %v257
  %v274 = vpack.c.b16 %v258, %v258
  %v275 = vpack.c.b16 %v259, %v259
  %v276 = vpack.c.b16 %v260, %v260
  %v277 = vpack.c.b16 %v261, %v261
  %v278 = vpack.c.b16 %v262, %v262
  %v279 = vpack.c.b16 %v263, %v263
  %v280 = vpack.c.b16 %v264, %v264
  %v281 = vpack.c.b16 %v265, %v265
  %v282 = vpack.c.b16 %v266, %v266
  %v283 = vpack.c.b16 %v267, %v267
  %v284 = vpack.c.b16 %v268, %v268
  %v285 = vpack.c.b16 %v269, %v269
  %v286 = vpack.c.b16 %v270, %v270
  %v287 = vpack.c.b16 %v271, %v271
  %304 = vst [vmem:[%s3] sm:$0xf] %v272
  %305 = vst [vmem:[%s3 + $0x4] sm:$0xf] %v273
  %306 = vst [vmem:[%s3 + $0x8] sm:$0xf] %v274
  %307 = vst [vmem:[%s3 + $0xc] sm:$0xf] %v275
  %308 = vst [vmem:[%s3 + $0x10] sm:$0xf] %v276
  %309 = vst [vmem:[%s3 + $0x14] sm:$0xf] %v277
  %310 = vst [vmem:[%s3 + $0x18] sm:$0xf] %v278
  %311 = vst [vmem:[%s3 + $0x1c] sm:$0xf] %v279
  %312 = vst [vmem:[%s3 + $0x20] sm:$0xf] %v280
  %313 = vst [vmem:[%s3 + $0x24] sm:$0xf] %v281
  %314 = vst [vmem:[%s3 + $0x28] sm:$0xf] %v282
  %315 = vst [vmem:[%s3 + $0x2c] sm:$0xf] %v283
  %316 = vst [vmem:[%s3 + $0x30] sm:$0xf] %v284
  %317 = vst [vmem:[%s3 + $0x34] sm:$0xf] %v285
  %318 = vst [vmem:[%s3 + $0x38] sm:$0xf] %v286
  %319 = vst [vmem:[%s3 + $0x3c] sm:$0xf] %v287
  // Predicated region
  $region14: #{_lambda_.3} parent=0 // pred_check
    _
  $region15: #{_lambda_.3} parent=0 // pred_check_branch
    %321 = sbr.rel (0) target = $region17
  $region16: #{_lambda_.3} parent=0 // pred_region
    _
  $region17: #{_lambda_.3} parent=0 // pred_fallthru
    _
  // Predicated region
  $region18: #{_lambda_.3} parent=0 // pred_check
    _
  $region19: #{_lambda_.3} parent=0 // pred_check_branch
    %323 = sbr.rel (0) target = $region21
  $region20: #{_lambda_.3} parent=0 // pred_region
    _
  $region21: #{_lambda_.3} parent=0 // pred_fallthru
    _

// kernel: _lambda_.4
$region0: #{_lambda_.4}
  #allocation0 [shape = 'u32[]', space=smem, size = 0x4, offset = 0x4, fixed_abs, tag = 'smem constant byte address 0x4 - core index']
  #allocation1 [shape = 'u32[144,128]{1,0:T(1,128)}', space=vmem, size = 0x12000, scoped, tag = 'internal scratch']
  %s0 = inlined_call_operand.vmem [shape: bf16[128,80], index: 0, kind: input, shape index: {}]
  %s1 = inlined_call_operand.vmem [shape: bf16[80,128], index: 1, kind: input, shape index: {}]
  %s2 = inlined_call_operand.vmem [shape: f32[1,128], index: 2, kind: input, shape index: {}]
  %s3 = inlined_call_operand.vmem [shape: bf16[128,128], index: 3, kind: output, shape index: {}]
  %s4 = sld [smem:[#allocation0]]
  $region22: #{_lambda_.4} parent=0
    _
  %s6 = ssub.s32 1, %s4
  %s7 = scalar_select 0, %s6, %s4
  // Predicated region
  $region2: #{_lambda_.4} parent=0 // pred_check
    _
  $region3: #{_lambda_.4} parent=0 // pred_check_branch
    %9 = sbr.rel (0) target = $region5
  $region4: #{_lambda_.4} parent=0 // pred_region
    _
  $region5: #{_lambda_.4} parent=0 // pred_fallthru
    _
  // Predicated region
  $region6: #{_lambda_.4} parent=0 // pred_check
    _
  $region7: #{_lambda_.4} parent=0 // pred_check_branch
    %11 = sbr.rel (0) target = $region9
  $region8: #{_lambda_.4} parent=0 // pred_region
    _
  $region9: #{_lambda_.4} parent=0 // pred_fallthru
    _
  // Predicated region
  $region10: #{_lambda_.4} parent=0 // pred_check
    _
  $region11: #{_lambda_.4} parent=0 // pred_check_branch
    %13 = sbr.rel (0) target = $region13
  $region12: #{_lambda_.4} parent=0 // pred_region
    _
  $region13: #{_lambda_.4} parent=0 // pred_fallthru
    _
  %v15 = vld [vmem:[%s0] sm:$0xf]
  %v16 = vld [vmem:[%s0 + $0x4] sm:$0xf]
  %v17 = vld [vmem:[%s0 + $0x8] sm:$0xf]
  %v18 = vld [vmem:[%s0 + $0xc] sm:$0xf]
  %v19 = vld [vmem:[%s0 + $0x10] sm:$0xf]
  %v20 = vld [vmem:[%s0 + $0x14] sm:$0xf]
  %v21 = vld [vmem:[%s0 + $0x18] sm:$0xf]
  %v22 = vld [vmem:[%s0 + $0x1c] sm:$0xf]
  %v23 = vld [vmem:[%s0 + $0x20] sm:$0xf]
  %v24 = vld [vmem:[%s0 + $0x24] sm:$0xf]
  %v25 = vld [vmem:[%s0 + $0x28] sm:$0xf]
  %v26 = vld [vmem:[%s0 + $0x2c] sm:$0xf]
  %v27 = vld [vmem:[%s0 + $0x30] sm:$0xf]
  %v28 = vld [vmem:[%s0 + $0x34] sm:$0xf]
  %v29 = vld [vmem:[%s0 + $0x38] sm:$0xf]
  %v30 = vld [vmem:[%s0 + $0x3c] sm:$0xf]
  %v31 = vld [vmem:[%s1] sm:$0xf]
  %v32 = vld [vmem:[%s1 + $0x4] sm:$0xf]
  %v33 = vld [vmem:[%s1 + $0x8] sm:$0xf]
  %v34 = vld [vmem:[%s1 + $0xc] sm:$0xf]
  %v35 = vld [vmem:[%s1 + $0x10] sm:$0xf]
  %v36 = vld [vmem:[%s1 + $0x14] sm:$0xf]
  %v37 = vld [vmem:[%s1 + $0x18] sm:$0xf]
  %v38 = vld [vmem:[%s1 + $0x1c] sm:$0xf]
  %v39 = vld [vmem:[%s1 + $0x20] sm:$0xf]
  %v40 = vld [vmem:[%s1 + $0x24] sm:$0xf]
  %v41 = vld [vmem:[%s2] sm:$0x1]
  %v43 = vlaneseq
  %v44 = vshrl.u32 %v43, 7
  %v45 = vsub.s32 0, %v44
  %v46 = vrot.slane %v41, %v45
  %v64 = vunpack.c.l.b16 %v15
  %v65 = vunpack.c.l.b16 %v16
  %v66 = vunpack.c.l.b16 %v17
  %v67 = vunpack.c.l.b16 %v18
  %v68 = vunpack.c.l.b16 %v19
  %v69 = vunpack.c.l.b16 %v20
  %v70 = vunpack.c.l.b16 %v21
  %v71 = vunpack.c.l.b16 %v22
  %v72 = vunpack.c.l.b16 %v23
  %v73 = vunpack.c.l.b16 %v24
  %v74 = vunpack.c.l.b16 %v25
  %v75 = vunpack.c.l.b16 %v26
  %v76 = vunpack.c.l.b16 %v27
  %v77 = vunpack.c.l.b16 %v28
  %v78 = vunpack.c.l.b16 %v29
  %v79 = vunpack.c.l.b16 %v30
  %v80 = vpack.c.b16 %v65, %v64
  %v81 = vpack.c.b16 %v67, %v66
  %v82 = vpack.c.b16 %v69, %v68
  %v83 = vpack.c.b16 %v71, %v70
  %v84 = vpack.c.b16 %v73, %v72
  %v85 = vpack.c.b16 %v75, %v74
  %v86 = vpack.c.b16 %v77, %v76
  %v87 = vpack.c.b16 %v79, %v78
  %v98 = vunpack.c.l.b16 %v31
  %v99 = vunpack.c.l.b16 %v32
  %v100 = vunpack.c.l.b16 %v33
  %v101 = vunpack.c.l.b16 %v34
  %v102 = vunpack.c.l.b16 %v35
  %v103 = vunpack.c.l.b16 %v36
  %v104 = vunpack.c.l.b16 %v37
  %v105 = vunpack.c.l.b16 %v38
  %v106 = vunpack.c.l.b16 %v39
  %v107 = vunpack.c.l.b16 %v40
  %v108 = vpack.c.b16 %v99, %v98
  %v109 = vpack.c.b16 %v101, %v100
  %v110 = vpack.c.b16 %v103, %v102
  %v111 = vpack.c.b16 %v105, %v104
  %v112 = vpack.c.b16 %v107, %v106
  %vm118 = vcmask 654336
  %v120 = vsel %vm118, %v80, 0
  %v123 = vsel %vm118, %v81, 0
  %v126 = vsel %vm118, %v82, 0
  %v129 = vsel %vm118, %v83, 0
  %v132 = vsel %vm118, %v84, 0
  %v135 = vsel %vm118, %v85, 0
  %v138 = vsel %vm118, %v86, 0
  %v141 = vsel %vm118, %v87, 0
  %143 = vmatprep.subr.bf16.mxu0 0
  %144 = vmatpush1.bf16.msra.mxu0 0
  %145 = vmatprep.subr.bf16.mxu0 0
  %146 = vmatpush1.bf16.msra.mxu0 0
  %147 = vmatprep.subr.bf16.mxu0 0
  %148 = vmatpush1.bf16.msra.mxu0 0
  %149 = vmatprep.subr.bf16.mxu0 0
  %150 = vmatpush1.bf16.msra.mxu0 %v112
  %151 = vmatprep.subr.bf16.mxu0 0
  %152 = vmatpush1.bf16.msra.mxu0 %v111
  %153 = vmatprep.subr.bf16.mxu0 0
  %154 = vmatpush1.bf16.msra.mxu0 %v110
  %155 = vmatprep.subr.bf16.mxu0 0
  %156 = vmatpush1.bf16.msra.mxu0 %v109
  %157 = vmatprep.subr.bf16.mxu0 0
  %158 = vmatpush1.bf16.msra.mxu0 %v108
  %159 = vmatprep.subr.bf16.mxu0 0
  %160 = vmatpush2.bf16.msra.mxu0 0
  %161 = vmatprep.subr.bf16.mxu0 0
  %162 = vmatpush2.bf16.msra.mxu0 0
  %163 = vmatprep.subr.bf16.mxu0 0
  %164 = vmatpush2.bf16.msra.mxu0 0
  %165 = vmatprep.subr.bf16.mxu0 0
  %166 = vmatpush2.bf16.msra.mxu0 0
  %167 = vmatprep.subr.bf16.mxu0 0
  %168 = vmatpush2.bf16.msra.mxu0 0
  %169 = vmatprep.subr.bf16.mxu0 0
  %170 = vmatpush2.bf16.msra.mxu0 0
  %171 = vmatprep.subr.bf16.mxu0 0
  %172 = vmatpush2.bf16.msra.mxu0 0
  %173 = vmatprep.subr.bf16.mxu0 0
  %174 = vmatpush2.bf16.msra.mxu0 0
  %175 = vmatprep.mubr.bf16.mxu0 0
  %176 = vmatmul.mubr.bf16.gmra.mxu0 %v120
  %v177 = vpop.f32.mrf.mxu0
  %v178 = vadd.f32 %v46, %v177
  %v179 = vpop.f32.mrf.mxu0
  %v180 = vpop.f32.mrf.mxu0
  %v181 = vadd.f32 %v46, %v180
  %v182 = vpop.f32.mrf.mxu0
  %183 = vmatprep.mubr.bf16.mxu0 0
  %184 = vmatmul.mubr.bf16.gmra.mxu0 %v123
  %v185 = vpop.f32.mrf.mxu0
  %v186 = vadd.f32 %v46, %v185
  %v187 = vpop.f32.mrf.mxu0
  %v188 = vpop.f32.mrf.mxu0
  %v189 = vadd.f32 %v46, %v188
  %v190 = vpop.f32.mrf.mxu0
  %191 = vmatprep.mubr.bf16.mxu0 0
  %192 = vmatmul.mubr.bf16.gmra.mxu0 %v126
  %v193 = vpop.f32.mrf.mxu0
  %v194 = vadd.f32 %v46, %v193
  %v195 = vpop.f32.mrf.mxu0
  %v196 = vpop.f32.mrf.mxu0
  %v197 = vadd.f32 %v46, %v196
  %v198 = vpop.f32.mrf.mxu0
  %199 = vmatprep.mubr.bf16.mxu0 0
  %200 = vmatmul.mubr.bf16.gmra.mxu0 %v129
  %v201 = vpop.f32.mrf.mxu0
  %v202 = vadd.f32 %v46, %v201
  %v203 = vpop.f32.mrf.mxu0
  %v204 = vpop.f32.mrf.mxu0
  %v205 = vadd.f32 %v46, %v204
  %v206 = vpop.f32.mrf.mxu0
  %207 = vmatprep.mubr.bf16.mxu0 0
  %208 = vmatmul.mubr.bf16.gmra.mxu0 %v132
  %v209 = vpop.f32.mrf.mxu0
  %v210 = vadd.f32 %v46, %v209
  %v211 = vpop.f32.mrf.mxu0
  %v212 = vpop.f32.mrf.mxu0
  %v213 = vadd.f32 %v46, %v212
  %v214 = vpop.f32.mrf.mxu0
  %215 = vmatprep.mubr.bf16.mxu0 0
  %216 = vmatmul.mubr.bf16.gmra.mxu0 %v135
  %v217 = vpop.f32.mrf.mxu0
  %v218 = vadd.f32 %v46, %v217
  %v219 = vpop.f32.mrf.mxu0
  %v220 = vpop.f32.mrf.mxu0
  %v221 = vadd.f32 %v46, %v220
  %v222 = vpop.f32.mrf.mxu0
  %223 = vmatprep.mubr.bf16.mxu0 0
  %224 = vmatmul.mubr.bf16.gmra.mxu0 %v138
  %v225 = vpop.f32.mrf.mxu0
  %v226 = vadd.f32 %v46, %v225
  %v227 = vpop.f32.mrf.mxu0
  %v228 = vpop.f32.mrf.mxu0
  %v229 = vadd.f32 %v46, %v228
  %v230 = vpop.f32.mrf.mxu0
  %231 = vmatprep.mubr.bf16.mxu0 0
  %232 = vmatmul.mubr.bf16.gmra.mxu0 %v141
  %v233 = vpop.f32.mrf.mxu0
  %v234 = vadd.f32 %v46, %v233
  %v235 = vpop.f32.mrf.mxu0
  %v236 = vpop.f32.mrf.mxu0
  %v237 = vadd.f32 %v46, %v236
  %v238 = vpop.f32.mrf.mxu0
  %239 = vdwg.mxu0
  %v240 = vmax.f32 %v178, 0.0
  %v241 = vmax.f32 %v181, 0.0
  %v242 = vmax.f32 %v186, 0.0
  %v243 = vmax.f32 %v189, 0.0
  %v244 = vmax.f32 %v194, 0.0
  %v245 = vmax.f32 %v197, 0.0
  %v246 = vmax.f32 %v202, 0.0
  %v247 = vmax.f32 %v205, 0.0
  %v248 = vmax.f32 %v210, 0.0
  %v249 = vmax.f32 %v213, 0.0
  %v250 = vmax.f32 %v218, 0.0
  %v251 = vmax.f32 %v221, 0.0
  %v252 = vmax.f32 %v226, 0.0
  %v253 = vmax.f32 %v229, 0.0
  %v254 = vmax.f32 %v234, 0.0
  %v255 = vmax.f32 %v237, 0.0
  %v256 = vpack.c.bf16 %v241, %v240
  %v257 = vpack.c.bf16 %v243, %v242
  %v258 = vpack.c.bf16 %v245, %v244
  %v259 = vpack.c.bf16 %v247, %v246
  %v260 = vpack.c.bf16 %v249, %v248
  %v261 = vpack.c.bf16 %v251, %v250
  %v262 = vpack.c.bf16 %v253, %v252
  %v263 = vpack.c.bf16 %v255, %v254
  %v272 = vunpack.c.l.b16 %v256
  %v273 = vunpack.c.h.b16 %v256
  %v274 = vunpack.c.l.b16 %v257
  %v275 = vunpack.c.h.b16 %v257
  %v276 = vunpack.c.l.b16 %v258
  %v277 = vunpack.c.h.b16 %v258
  %v278 = vunpack.c.l.b16 %v259
  %v279 = vunpack.c.h.b16 %v259
  %v280 = vunpack.c.l.b16 %v260
  %v281 = vunpack.c.h.b16 %v260
  %v282 = vunpack.c.l.b16 %v261
  %v283 = vunpack.c.h.b16 %v261
  %v284 = vunpack.c.l.b16 %v262
  %v285 = vunpack.c.h.b16 %v262
  %v286 = vunpack.c.l.b16 %v263
  %v287 = vunpack.c.h.b16 %v263
  %v288 = vpack.c.b16 %v272, %v272
  %v289 = vpack.c.b16 %v273, %v273
  %v290 = vpack.c.b16 %v274, %v274
  %v291 = vpack.c.b16 %v275, %v275
  %v292 = vpack.c.b16 %v276, %v276
  %v293 = vpack.c.b16 %v277, %v277
  %v294 = vpack.c.b16 %v278, %v278
  %v295 = vpack.c.b16 %v279, %v279
  %v296 = vpack.c.b16 %v280, %v280
  %v297 = vpack.c.b16 %v281, %v281
  %v298 = vpack.c.b16 %v282, %v282
  %v299 = vpack.c.b16 %v283, %v283
  %v300 = vpack.c.b16 %v284, %v284
  %v301 = vpack.c.b16 %v285, %v285
  %v302 = vpack.c.b16 %v286, %v286
  %v303 = vpack.c.b16 %v287, %v287
  %320 = vst [vmem:[%s3] sm:$0xf] %v288
  %321 = vst [vmem:[%s3 + $0x4] sm:$0xf] %v289
  %322 = vst [vmem:[%s3 + $0x8] sm:$0xf] %v290
  %323 = vst [vmem:[%s3 + $0xc] sm:$0xf] %v291
  %324 = vst [vmem:[%s3 + $0x10] sm:$0xf] %v292
  %325 = vst [vmem:[%s3 + $0x14] sm:$0xf] %v293
  %326 = vst [vmem:[%s3 + $0x18] sm:$0xf] %v294
  %327 = vst [vmem:[%s3 + $0x1c] sm:$0xf] %v295
  %328 = vst [vmem:[%s3 + $0x20] sm:$0xf] %v296
  %329 = vst [vmem:[%s3 + $0x24] sm:$0xf] %v297
  %330 = vst [vmem:[%s3 + $0x28] sm:$0xf] %v298
  %331 = vst [vmem:[%s3 + $0x2c] sm:$0xf] %v299
  %332 = vst [vmem:[%s3 + $0x30] sm:$0xf] %v300
  %333 = vst [vmem:[%s3 + $0x34] sm:$0xf] %v301
  %334 = vst [vmem:[%s3 + $0x38] sm:$0xf] %v302
  %335 = vst [vmem:[%s3 + $0x3c] sm:$0xf] %v303
  // Predicated region
  $region14: #{_lambda_.4} parent=0 // pred_check
    _
  $region15: #{_lambda_.4} parent=0 // pred_check_branch
    %337 = sbr.rel (0) target = $region17
  $region16: #{_lambda_.4} parent=0 // pred_region
    _
  $region17: #{_lambda_.4} parent=0 // pred_fallthru
    _
  // Predicated region
  $region18: #{_lambda_.4} parent=0 // pred_check
    _
  $region19: #{_lambda_.4} parent=0 // pred_check_branch
    %339 = sbr.rel (0) target = $region21
  $region20: #{_lambda_.4} parent=0 // pred_region
    _
  $region21: #{_lambda_.4} parent=0 // pred_fallthru
    _

// kernel: _lambda_.5
$region0: #{_lambda_.5}
  #allocation0 [shape = 'u32[]', space=smem, size = 0x4, offset = 0x4, fixed_abs, tag = 'smem constant byte address 0x4 - core index']
  #allocation1 [shape = 'u32[144,128]{1,0:T(1,128)}', space=vmem, size = 0x12000, scoped, tag = 'internal scratch']
  %s0 = inlined_call_operand.vmem [shape: bf16[128,16], index: 0, kind: input, shape index: {}]
  %s1 = inlined_call_operand.vmem [shape: bf16[16,128], index: 1, kind: input, shape index: {}]
  %s2 = inlined_call_operand.vmem [shape: f32[1,128], index: 2, kind: input, shape index: {}]
  %s3 = inlined_call_operand.vmem [shape: f32[128,128], index: 3, kind: output, shape index: {}]
  %s4 = sld [smem:[#allocation0]]
  $region22: #{_lambda_.5} parent=0
    _
  %s6 = ssub.s32 1, %s4
  %s7 = scalar_select 0, %s6, %s4
  // Predicated region
  $region2: #{_lambda_.5} parent=0 // pred_check
    _
  $region3: #{_lambda_.5} parent=0 // pred_check_branch
    %9 = sbr.rel (0) target = $region5
  $region4: #{_lambda_.5} parent=0 // pred_region
    _
  $region5: #{_lambda_.5} parent=0 // pred_fallthru
    _
  // Predicated region
  $region6: #{_lambda_.5} parent=0 // pred_check
    _
  $region7: #{_lambda_.5} parent=0 // pred_check_branch
    %11 = sbr.rel (0) target = $region9
  $region8: #{_lambda_.5} parent=0 // pred_region
    _
  $region9: #{_lambda_.5} parent=0 // pred_fallthru
    _
  // Predicated region
  $region10: #{_lambda_.5} parent=0 // pred_check
    _
  $region11: #{_lambda_.5} parent=0 // pred_check_branch
    %13 = sbr.rel (0) target = $region13
  $region12: #{_lambda_.5} parent=0 // pred_region
    _
  $region13: #{_lambda_.5} parent=0 // pred_fallthru
    _
  %v15 = vld [vmem:[%s0] sm:$0xf]
  %v16 = vld [vmem:[%s0 + $0x4] sm:$0xf]
  %v17 = vld [vmem:[%s0 + $0x8] sm:$0xf]
  %v18 = vld [vmem:[%s0 + $0xc] sm:$0xf]
  %v19 = vld [vmem:[%s0 + $0x10] sm:$0xf]
  %v20 = vld [vmem:[%s0 + $0x14] sm:$0xf]
  %v21 = vld [vmem:[%s0 + $0x18] sm:$0xf]
  %v22 = vld [vmem:[%s0 + $0x1c] sm:$0xf]
  %v23 = vld [vmem:[%s0 + $0x20] sm:$0xf]
  %v24 = vld [vmem:[%s0 + $0x24] sm:$0xf]
  %v25 = vld [vmem:[%s0 + $0x28] sm:$0xf]
  %v26 = vld [vmem:[%s0 + $0x2c] sm:$0xf]
  %v27 = vld [vmem:[%s0 + $0x30] sm:$0xf]
  %v28 = vld [vmem:[%s0 + $0x34] sm:$0xf]
  %v29 = vld [vmem:[%s0 + $0x38] sm:$0xf]
  %v30 = vld [vmem:[%s0 + $0x3c] sm:$0xf]
  %v31 = vld [vmem:[%s1] sm:$0xf]
  %v32 = vld [vmem:[%s1 + $0x4] sm:$0xf]
  %v33 = vld [vmem:[%s2] sm:$0x1]
  %v35 = vlaneseq
  %v36 = vshrl.u32 %v35, 7
  %v37 = vsub.s32 0, %v36
  %v38 = vrot.slane %v33, %v37
  %v56 = vunpack.c.l.b16 %v15
  %v57 = vunpack.c.l.b16 %v16
  %v58 = vunpack.c.l.b16 %v17
  %v59 = vunpack.c.l.b16 %v18
  %v60 = vunpack.c.l.b16 %v19
  %v61 = vunpack.c.l.b16 %v20
  %v62 = vunpack.c.l.b16 %v21
  %v63 = vunpack.c.l.b16 %v22
  %v64 = vunpack.c.l.b16 %v23
  %v65 = vunpack.c.l.b16 %v24
  %v66 = vunpack.c.l.b16 %v25
  %v67 = vunpack.c.l.b16 %v26
  %v68 = vunpack.c.l.b16 %v27
  %v69 = vunpack.c.l.b16 %v28
  %v70 = vunpack.c.l.b16 %v29
  %v71 = vunpack.c.l.b16 %v30
  %v72 = vpack.c.b16 %v57, %v56
  %v73 = vpack.c.b16 %v59, %v58
  %v74 = vpack.c.b16 %v61, %v60
  %v75 = vpack.c.b16 %v63, %v62
  %v76 = vpack.c.b16 %v65, %v64
  %v77 = vpack.c.b16 %v67, %v66
  %v78 = vpack.c.b16 %v69, %v68
  %v79 = vpack.c.b16 %v71, %v70
  %v82 = vunpack.c.l.b16 %v31
  %v83 = vunpack.c.l.b16 %v32
  %v84 = vpack.c.b16 %v83, %v82
  %vm86 = vcmask 130048
  %v88 = vsel %vm86, %v72, 0
  %v91 = vsel %vm86, %v73, 0
  %v94 = vsel %vm86, %v74, 0
  %v97 = vsel %vm86, %v75, 0
  %v100 = vsel %vm86, %v76, 0
  %v103 = vsel %vm86, %v77, 0
  %v106 = vsel %vm86, %v78, 0
  %v109 = vsel %vm86, %v79, 0
  %111 = vmatprep.subr.bf16.mxu0 0
  %112 = vmatpush1.bf16.msra.mxu0 0
  %113 = vmatprep.subr.bf16.mxu0 0
  %114 = vmatpush1.bf16.msra.mxu0 0
  %115 = vmatprep.subr.bf16.mxu0 0
  %116 = vmatpush1.bf16.msra.mxu0 0
  %117 = vmatprep.subr.bf16.mxu0 0
  %118 = vmatpush1.bf16.msra.mxu0 0
  %119 = vmatprep.subr.bf16.mxu0 0
  %120 = vmatpush1.bf16.msra.mxu0 0
  %121 = vmatprep.subr.bf16.mxu0 0
  %122 = vmatpush1.bf16.msra.mxu0 0
  %123 = vmatprep.subr.bf16.mxu0 0
  %124 = vmatpush1.bf16.msra.mxu0 0
  %125 = vmatprep.subr.bf16.mxu0 0
  %126 = vmatpush1.bf16.msra.mxu0 %v84
  %127 = vmatprep.subr.bf16.mxu0 0
  %128 = vmatpush2.bf16.msra.mxu0 0
  %129 = vmatprep.subr.bf16.mxu0 0
  %130 = vmatpush2.bf16.msra.mxu0 0
  %131 = vmatprep.subr.bf16.mxu0 0
  %132 = vmatpush2.bf16.msra.mxu0 0
  %133 = vmatprep.subr.bf16.mxu0 0
  %134 = vmatpush2.bf16.msra.mxu0 0
  %135 = vmatprep.subr.bf16.mxu0 0
  %136 = vmatpush2.bf16.msra.mxu0 0
  %137 = vmatprep.subr.bf16.mxu0 0
  %138 = vmatpush2.bf16.msra.mxu0 0
  %139 = vmatprep.subr.bf16.mxu0 0
  %140 = vmatpush2.bf16.msra.mxu0 0
  %141 = vmatprep.subr.bf16.mxu0 0
  %142 = vmatpush2.bf16.msra.mxu0 0
  %143 = vmatprep.mubr.bf16.mxu0 0
  %144 = vmatmul.mubr.bf16.gmra.mxu0 %v88
  %v145 = vpop.f32.mrf.mxu0
  %v146 = vadd.f32 %v38, %v145
  %v147 = vpop.f32.mrf.mxu0
  %v148 = vpop.f32.mrf.mxu0
  %v149 = vadd.f32 %v38, %v148
  %v150 = vpop.f32.mrf.mxu0
  %151 = vmatprep.mubr.bf16.mxu0 0
  %152 = vmatmul.mubr.bf16.gmra.mxu0 %v91
  %v153 = vpop.f32.mrf.mxu0
  %v154 = vadd.f32 %v38, %v153
  %v155 = vpop.f32.mrf.mxu0
  %v156 = vpop.f32.mrf.mxu0
  %v157 = vadd.f32 %v38, %v156
  %v158 = vpop.f32.mrf.mxu0
  %159 = vmatprep.mubr.bf16.mxu0 0
  %160 = vmatmul.mubr.bf16.gmra.mxu0 %v94
  %v161 = vpop.f32.mrf.mxu0
  %v162 = vadd.f32 %v38, %v161
  %v163 = vpop.f32.mrf.mxu0
  %v164 = vpop.f32.mrf.mxu0
  %v165 = vadd.f32 %v38, %v164
  %v166 = vpop.f32.mrf.mxu0
  %167 = vmatprep.mubr.bf16.mxu0 0
  %168 = vmatmul.mubr.bf16.gmra.mxu0 %v97
  %v169 = vpop.f32.mrf.mxu0
  %v170 = vadd.f32 %v38, %v169
  %v171 = vpop.f32.mrf.mxu0
  %v172 = vpop.f32.mrf.mxu0
  %v173 = vadd.f32 %v38, %v172
  %v174 = vpop.f32.mrf.mxu0
  %175 = vmatprep.mubr.bf16.mxu0 0
  %176 = vmatmul.mubr.bf16.gmra.mxu0 %v100
  %v177 = vpop.f32.mrf.mxu0
  %v178 = vadd.f32 %v38, %v177
  %v179 = vpop.f32.mrf.mxu0
  %v180 = vpop.f32.mrf.mxu0
  %v181 = vadd.f32 %v38, %v180
  %v182 = vpop.f32.mrf.mxu0
  %183 = vmatprep.mubr.bf16.mxu0 0
  %184 = vmatmul.mubr.bf16.gmra.mxu0 %v103
  %v185 = vpop.f32.mrf.mxu0
  %v186 = vadd.f32 %v38, %v185
  %v187 = vpop.f32.mrf.mxu0
  %v188 = vpop.f32.mrf.mxu0
  %v189 = vadd.f32 %v38, %v188
  %v190 = vpop.f32.mrf.mxu0
  %191 = vmatprep.mubr.bf16.mxu0 0
  %192 = vmatmul.mubr.bf16.gmra.mxu0 %v106
  %v193 = vpop.f32.mrf.mxu0
  %v194 = vadd.f32 %v38, %v193
  %v195 = vpop.f32.mrf.mxu0
  %v196 = vpop.f32.mrf.mxu0
  %v197 = vadd.f32 %v38, %v196
  %v198 = vpop.f32.mrf.mxu0
  %199 = vmatprep.mubr.bf16.mxu0 0
  %200 = vmatmul.mubr.bf16.gmra.mxu0 %v109
  %v201 = vpop.f32.mrf.mxu0
  %v202 = vadd.f32 %v38, %v201
  %v203 = vpop.f32.mrf.mxu0
  %v204 = vpop.f32.mrf.mxu0
  %v205 = vadd.f32 %v38, %v204
  %v206 = vpop.f32.mrf.mxu0
  %207 = vdwg.mxu0
  %208 = vst [vmem:[%s3] sm:$0xff] %v146
  %209 = vst [vmem:[%s3 + $0x8] sm:$0xff] %v149
  %210 = vst [vmem:[%s3 + $0x10] sm:$0xff] %v154
  %211 = vst [vmem:[%s3 + $0x18] sm:$0xff] %v157
  %212 = vst [vmem:[%s3 + $0x20] sm:$0xff] %v162
  %213 = vst [vmem:[%s3 + $0x28] sm:$0xff] %v165
  %214 = vst [vmem:[%s3 + $0x30] sm:$0xff] %v170
  %215 = vst [vmem:[%s3 + $0x38] sm:$0xff] %v173
  %216 = vst [vmem:[%s3 + $0x40] sm:$0xff] %v178
  %217 = vst [vmem:[%s3 + $0x48] sm:$0xff] %v181
  %218 = vst [vmem:[%s3 + $0x50] sm:$0xff] %v186
  %219 = vst [vmem:[%s3 + $0x58] sm:$0xff] %v189
  %220 = vst [vmem:[%s3 + $0x60] sm:$0xff] %v194
  %221 = vst [vmem:[%s3 + $0x68] sm:$0xff] %v197
  %222 = vst [vmem:[%s3 + $0x70] sm:$0xff] %v202
  %223 = vst [vmem:[%s3 + $0x78] sm:$0xff] %v205
  // Predicated region
  $region14: #{_lambda_.5} parent=0 // pred_check
    _
  $region15: #{_lambda_.5} parent=0 // pred_check_branch
    %225 = sbr.rel (0) target = $region17
  $region16: #{_lambda_.5} parent=0 // pred_region
    _
  $region17: #{_lambda_.5} parent=0 // pred_fallthru
    _
  // Predicated region
  $region18: #{_lambda_.5} parent=0 // pred_check
    _
  $region19: #{_lambda_.5} parent=0 // pred_check_branch
    %227 = sbr.rel (0) target = $region21
  $region20: #{_lambda_.5} parent=0 // pred_region
    _
  $region21: #{_lambda_.5} parent=0 // pred_fallthru
    _

</llo_original>
